<compile_context>
chip_gen: v7x
topology: tpu7x:2x2x1
jax: 0.10.0
libtpu: 0.0.40
codegen_flags: <defaults>
</compile_context>

<pallas_src>
import jax
import jax.numpy as jnp
from jax.experimental import pallas as pl
from jax.experimental.pallas import tpu as pltpu


def _round_up(x, m):
    return ((x + m - 1) // m) * m


def _sigmoid_eup(x):
    # exp and reciprocal both execute on the EUP slot; keep in f32.
    return pl.reciprocal(1.0 + jnp.exp(-x), approx=True)


def fcnet_kernel(x_ref, w1_ref, b1_ref, w2_ref, b2_ref, w3_ref, b3_ref, o_ref):
    # Fused hot path: 3 MXU matmuls + 2 EUP sigmoids on VMEM tiles.
    mm_dtype = w1_ref.dtype
    x = x_ref[...].astype(mm_dtype)
    h = jnp.dot(x, w1_ref[...], preferred_element_type=jnp.float32) + b1_ref[...]
    h = _sigmoid_eup(h)
    h = jnp.dot(h.astype(mm_dtype), w2_ref[...],
                preferred_element_type=jnp.float32) + b2_ref[...]
    h = _sigmoid_eup(h)
    out = jnp.dot(h.astype(mm_dtype), w3_ref[...],
                  preferred_element_type=jnp.float32) + b3_ref[...]
    o_ref[...] = out.astype(o_ref.dtype)


def prepare_params(w1, b1, w2, b2, w3, b3, *, matmul_dtype=jnp.bfloat16):
    """One-time weight prep: lane-dense (128-multiple) out-feature padding +
    cast to the matmul dtype.  Zero-padded hidden columns produce sigmoid(0)=0.5
    activations, but the corresponding (zero) weight rows of the next layer kill
    their contribution, so results are exact w.r.t. the unpadded network."""
    n_input, n_hidden = w1.shape
    num_classes = w3.shape[1]
    nh_p = _round_up(n_hidden, 128)
    nc_p = _round_up(num_classes, 128)

    def padw(w, rows, cols):
        w = jnp.asarray(w, matmul_dtype)
        return jnp.pad(w, ((0, rows - w.shape[0]), (0, cols - w.shape[1])))

    def padb(b, cols):
        b = jnp.reshape(jnp.asarray(b, jnp.float32), (1, -1))
        return jnp.pad(b, ((0, 0), (0, cols - b.shape[1])))

    return dict(
        w1=padw(w1, n_input, nh_p), b1=padb(b1, nh_p),
        w2=padw(w2, nh_p, nh_p),    b2=padb(b2, nh_p),
        w3=padw(w3, nh_p, nc_p),    b3=padb(b3, nc_p),
        n_input=n_input, n_hidden=n_hidden, num_classes=num_classes,
    )


def fcnet_forward(x, params, *, batch_tile=512, out_dtype=jnp.float32):
    """FCNet forward with pre-prepared (padded/cast) params from prepare_params.

    batch_tile: rows per grid step (>=128 recommended for large batches; the
                single-block path is used automatically for small batches).
    out_dtype:  jnp.float32 by default; pass jnp.bfloat16 to halve the output
                writeback when downstream tolerates it.
    """
    B, n_input = x.shape
    assert n_input == params["n_input"], "input feature mismatch"
    w1, b1 = params["w1"], params["b1"]
    w2, b2 = params["w2"], params["b2"]
    w3, b3 = params["w3"], params["b3"]
    nh_p = w1.shape[1]
    nc_p = w3.shape[1]
    num_classes = params["num_classes"]

    # Batch tiling: no HBM batch padding — partial last tile is masked by Pallas.
    if B <= batch_tile:
        bt = B                                   # single block == full batch dim
    else:
        bt = max(16, (batch_tile // 16) * 16)    # sublane-friendly tile
    grid = (pl.cdiv(B, bt),)

    # --- VMEM budget (weights single-buffered, x/out double-buffered). ---
    w_itm = jnp.dtype(w1.dtype).itemsize
    w_bytes = (w1.size + w2.size + w3.size) * w_itm
    b_bytes = (b1.size + b2.size + b3.size) * 4
    x_blk = bt * n_input * x.dtype.itemsize
    o_blk = bt * nc_p * jnp.dtype(out_dtype).itemsize
    act_bytes = 4 * bt * nh_p * 4                # f32 intermediates / casts slack
    need = w_bytes + b_bytes + 2 * (x_blk + o_blk) + act_bytes
    vmem_limit = int(min(max(int(need * 1.5) + (2 << 20), 16 << 20), 48 << 20))

    # Advisory cost so XLA schedules surrounding ops around the custom call.
    flops = 2 * B * (n_input * nh_p + nh_p * nh_p + nh_p * nc_p)
    cost = pl.CostEstimate(
        flops=flops,
        transcendentals=4 * B * nh_p,            # 2 sigmoids: exp + rcp each
        bytes_accessed=int(x.size * x.dtype.itemsize + w_bytes + b_bytes
                           + B * nc_p * jnp.dtype(out_dtype).itemsize),
    )

    const_map = lambda i: (0, 0)
    resident = lambda shape: pl.BlockSpec(shape, const_map,
                                          pipeline_mode=pl.Buffered(1))

    out = pl.pallas_call(
        fcnet_kernel,
        out_shape=jax.ShapeDtypeStruct((B, nc_p), out_dtype),
        grid_spec=pltpu.PrefetchScalarGridSpec(
            num_scalar_prefetch=0,
            grid=grid,
            in_specs=[
                pl.BlockSpec((bt, n_input), lambda i: (i, 0)),  # x tile (f32)
                resident(w1.shape),                             # W1 (resident)
                resident(b1.shape),                             # b1
                resident(w2.shape),                             # W2 (resident)
                resident(b2.shape),                             # b2
                resident(w3.shape),                             # W3 (resident)
                resident(b3.shape),                             # b3
            ],
            out_specs=pl.BlockSpec((bt, nc_p), lambda i: (i, 0)),
        ),
        compiler_params=pltpu.CompilerParams(
            # Batch axis is independent; on v7x CORE_PARALLEL / core_map can be
            # used to force 2-TC sharding if "parallel" alone doesn't split it.
            dimension_semantics=("parallel",),
            vmem_limit_bytes=vmem_limit,
        ),
        cost_estimate=cost,
    )(x, w1, b1, w2, b2, w3, b3)

    # Only the lane-padding of the class dim is sliced off (no row slice).
    return out[:, :num_classes]


def init_params(key, n_input, n_hidden, num_classes):
    # Mimic torch.nn.Linear default init: U(-1/sqrt(fan_in), 1/sqrt(fan_in)).
    ks = jax.random.split(key, 6)

    def lin(kw, kb, fan_in, fan_out):
        bound = 1.0 / jnp.sqrt(fan_in)
        w = jax.random.uniform(kw, (fan_in, fan_out), jnp.float32, -bound, bound)
        b = jax.random.uniform(kb, (1, fan_out), jnp.float32, -bound, bound)
        return w, b

    w1, b1 = lin(ks[0], ks[1], n_input, n_hidden)
    w2, b2 = lin(ks[2], ks[3], n_hidden, n_hidden)
    w3, b3 = lin(ks[4], ks[5], n_hidden, num_classes)
    return w1, b1, w2, b2, w3, b3


def _reference(x, raw_params):
    w1, b1, w2, b2, w3, b3 = raw_params
    h = jax.nn.sigmoid(x @ w1 + b1)
    h = jax.nn.sigmoid(h @ w2 + b2)
    return h @ w3 + b3


if __name__ == "__main__":
    key = jax.random.PRNGKey(0)
    B, n_input, n_hidden, num_classes = 8, 32, 64, 10

    k_x, k_p, k_x2 = jax.random.split(key, 3)
    x = jax.random.normal(k_x, (B, n_input), jnp.float32)
    raw = init_params(k_p, n_input, n_hidden, num_classes)

    # Default path: bf16 matmul inputs, f32 accumulation/activation.
    params_bf16 = prepare_params(*raw)               # matmul_dtype=bf16 default
    out = jax.block_until_ready(fcnet_forward(x, params_bf16))
    ref = _reference(x, raw)
    assert out.shape == (B, num_classes)
    assert jnp.allclose(out, ref, atol=0.1, rtol=0.1), "bf16 path mismatch"

    # f32 matmul path + multi-tile grid with a ragged (masked) last batch tile.
    params_f32 = prepare_params(*raw, matmul_dtype=jnp.float32)
    x2 = jax.random.normal(k_x2, (40, n_input), jnp.float32)
    out2 = jax.block_until_ready(fcnet_forward(x2, params_f32, batch_tile=16))
    ref2 = _reference(x2, raw)
    assert out2.shape == (40, num_classes)
    assert jnp.allclose(out2, ref2, atol=2e-2, rtol=2e-2), "f32 tiled mismatch"

    print("KERNEL_OK")
</pallas_src>

<mosaic_0001>
module attributes {stable_mosaic.version = 11 : i64} {
  func.func @fcnet_kernel(%arg0: i32, %arg1: memref<8x32xf32, #tpu.memory_space<vmem>>, %arg2: memref<32x128xbf16, #tpu.memory_space<vmem>>, %arg3: memref<1x128xf32, #tpu.memory_space<vmem>>, %arg4: memref<128x128xbf16, #tpu.memory_space<vmem>>, %arg5: memref<1x128xf32, #tpu.memory_space<vmem>>, %arg6: memref<128x128xbf16, #tpu.memory_space<vmem>>, %arg7: memref<1x128xf32, #tpu.memory_space<vmem>>, %arg8: memref<8x128xf32, #tpu.memory_space<vmem>>) attributes {dimension_semantics = [#tpu.dimension_semantics<parallel>], iteration_bounds = array<i64: 1>, scalar_prefetch = 0 : i64, scratch_operands = 0 : i64, tpu.core_type = #tpu.core_type<tc>, window_params = [{transform_indices = @transform_0, window_bounds = array<i64: 8, 32>}, {pipeline_mode = #tpu.pipeline_mode<synchronous>, transform_indices = @transform_1, window_bounds = array<i64: 32, 128>}, {pipeline_mode = #tpu.pipeline_mode<synchronous>, transform_indices = @transform_2, window_bounds = array<i64: 1, 128>}, {pipeline_mode = #tpu.pipeline_mode<synchronous>, transform_indices = @transform_3, window_bounds = array<i64: 128, 128>}, {pipeline_mode = #tpu.pipeline_mode<synchronous>, transform_indices = @transform_4, window_bounds = array<i64: 1, 128>}, {pipeline_mode = #tpu.pipeline_mode<synchronous>, transform_indices = @transform_5, window_bounds = array<i64: 128, 128>}, {pipeline_mode = #tpu.pipeline_mode<synchronous>, transform_indices = @transform_6, window_bounds = array<i64: 1, 128>}, {transform_indices = @transform_7, window_bounds = array<i64: 8, 128>}]} {
    %c0 = arith.constant 0 : index
    %c0_0 = arith.constant 0 : index
    %0 = vector.load %arg1[%c0, %c0_0] : memref<8x32xf32, #tpu.memory_space<vmem>>, vector<8x32xf32>
    %1 = arith.truncf %0 : vector<8x32xf32> to vector<8x32xbf16>
    %c0_1 = arith.constant 0 : index
    %c0_2 = arith.constant 0 : index
    %2 = vector.load %arg2[%c0_1, %c0_2] : memref<32x128xbf16, #tpu.memory_space<vmem>>, vector<32x128xbf16>
    %cst = arith.constant dense<0.000000e+00> : vector<8x128xf32>
    %3 = tpu.matmul %1, %2, %cst {dimension_numbers = #tpu.dot_dimension_numbers<[1], [0], [0], [1], [0, 0, 1, 1], [], []>} : vector<8x32xbf16>, vector<32x128xbf16>, vector<8x128xf32> -> vector<8x128xf32>
    %c0_3 = arith.constant 0 : index
    %c0_4 = arith.constant 0 : index
    %4 = vector.load %arg3[%c0_3, %c0_4] : memref<1x128xf32, #tpu.memory_space<vmem>>, vector<1x128xf32>
    %5 = vector.broadcast %4 : vector<1x128xf32> to vector<8x128xf32>
    %6 = arith.addf %3, %5 : vector<8x128xf32>
    %cst_5 = arith.constant 0.000000e+00 : f32
    %7 = vector.broadcast %cst_5 : f32 to vector<8x128xf32>
    %8 = arith.subf %7, %6 : vector<8x128xf32>
    %9 = math.exp %8 : vector<8x128xf32>
    %cst_6 = arith.constant 1.000000e+00 : f32
    %10 = vector.broadcast %cst_6 : f32 to vector<8x128xf32>
    %11 = arith.addf %10, %9 : vector<8x128xf32>
    %12 = tpu.reciprocal %11 {approx = true} : vector<8x128xf32> -> vector<8x128xf32>
    %13 = arith.truncf %12 : vector<8x128xf32> to vector<8x128xbf16>
    %c0_7 = arith.constant 0 : index
    %c0_8 = arith.constant 0 : index
    %14 = vector.load %arg4[%c0_7, %c0_8] : memref<128x128xbf16, #tpu.memory_space<vmem>>, vector<128x128xbf16>
    %cst_9 = arith.constant dense<0.000000e+00> : vector<8x128xf32>
    %15 = tpu.matmul %13, %14, %cst_9 {dimension_numbers = #tpu.dot_dimension_numbers<[1], [0], [0], [1], [0, 0, 1, 1], [], []>} : vector<8x128xbf16>, vector<128x128xbf16>, vector<8x128xf32> -> vector<8x128xf32>
    %c0_10 = arith.constant 0 : index
    %c0_11 = arith.constant 0 : index
    %16 = vector.load %arg5[%c0_10, %c0_11] : memref<1x128xf32, #tpu.memory_space<vmem>>, vector<1x128xf32>
    %17 = vector.broadcast %16 : vector<1x128xf32> to vector<8x128xf32>
    %18 = arith.addf %15, %17 : vector<8x128xf32>
    %cst_12 = arith.constant 0.000000e+00 : f32
    %19 = vector.broadcast %cst_12 : f32 to vector<8x128xf32>
    %20 = arith.subf %19, %18 : vector<8x128xf32>
    %21 = math.exp %20 : vector<8x128xf32>
    %cst_13 = arith.constant 1.000000e+00 : f32
    %22 = vector.broadcast %cst_13 : f32 to vector<8x128xf32>
    %23 = arith.addf %22, %21 : vector<8x128xf32>
    %24 = tpu.reciprocal %23 {approx = true} : vector<8x128xf32> -> vector<8x128xf32>
    %25 = arith.truncf %24 : vector<8x128xf32> to vector<8x128xbf16>
    %c0_14 = arith.constant 0 : index
    %c0_15 = arith.constant 0 : index
    %26 = vector.load %arg6[%c0_14, %c0_15] : memref<128x128xbf16, #tpu.memory_space<vmem>>, vector<128x128xbf16>
    %cst_16 = arith.constant dense<0.000000e+00> : vector<8x128xf32>
    %27 = tpu.matmul %25, %26, %cst_16 {dimension_numbers = #tpu.dot_dimension_numbers<[1], [0], [0], [1], [0, 0, 1, 1], [], []>} : vector<8x128xbf16>, vector<128x128xbf16>, vector<8x128xf32> -> vector<8x128xf32>
    %c0_17 = arith.constant 0 : index
    %c0_18 = arith.constant 0 : index
    %28 = vector.load %arg7[%c0_17, %c0_18] : memref<1x128xf32, #tpu.memory_space<vmem>>, vector<1x128xf32>
    %29 = vector.broadcast %28 : vector<1x128xf32> to vector<8x128xf32>
    %30 = arith.addf %27, %29 : vector<8x128xf32>
    %c0_19 = arith.constant 0 : index
    %c0_20 = arith.constant 0 : index
    %31 = vector.load %arg8[%c0_19, %c0_20] : memref<8x128xf32, #tpu.memory_space<vmem>>, vector<8x128xf32>
    tpu.vector_store %arg8[%c0_19, %c0_20], %30 {strides = array<i32>} : memref<8x128xf32, #tpu.memory_space<vmem>>, vector<8x128xf32>,
    return
  }
  func.func @transform_0(%arg0: i32) -> (i32, i32) {
    %c0_i32 = arith.constant 0 : i32
    %c0_i32_0 = arith.constant 0 : i32
    return %arg0, %c0_i32 : i32, i32
  }
  func.func @transform_1(%arg0: i32) -> (i32, i32) {
    %c0_i32 = arith.constant 0 : i32
    %c0_i32_0 = arith.constant 0 : i32
    %c0_i32_1 = arith.constant 0 : i32
    return %c0_i32, %c0_i32_0 : i32, i32
  }
  func.func @transform_2(%arg0: i32) -> (i32, i32) {
    %c0_i32 = arith.constant 0 : i32
    %c0_i32_0 = arith.constant 0 : i32
    %c0_i32_1 = arith.constant 0 : i32
    return %c0_i32, %c0_i32_0 : i32, i32
  }
  func.func @transform_3(%arg0: i32) -> (i32, i32) {
    %c0_i32 = arith.constant 0 : i32
    %c0_i32_0 = arith.constant 0 : i32
    %c0_i32_1 = arith.constant 0 : i32
    return %c0_i32, %c0_i32_0 : i32, i32
  }
  func.func @transform_4(%arg0: i32) -> (i32, i32) {
    %c0_i32 = arith.constant 0 : i32
    %c0_i32_0 = arith.constant 0 : i32
    %c0_i32_1 = arith.constant 0 : i32
    return %c0_i32, %c0_i32_0 : i32, i32
  }
  func.func @transform_5(%arg0: i32) -> (i32, i32) {
    %c0_i32 = arith.constant 0 : i32
    %c0_i32_0 = arith.constant 0 : i32
    %c0_i32_1 = arith.constant 0 : i32
    return %c0_i32, %c0_i32_0 : i32, i32
  }
  func.func @transform_6(%arg0: i32) -> (i32, i32) {
    %c0_i32 = arith.constant 0 : i32
    %c0_i32_0 = arith.constant 0 : i32
    %c0_i32_1 = arith.constant 0 : i32
    return %c0_i32, %c0_i32_0 : i32, i32
  }
  func.func @transform_7(%arg0: i32) -> (i32, i32) {
    %c0_i32 = arith.constant 0 : i32
    %c0_i32_0 = arith.constant 0 : i32
    return %arg0, %c0_i32 : i32, i32
  }
}

</mosaic_0001>

<llo_original>
// kernel: tpu_custom_call.1
$region0: #{tpu_custom_call.1}
  #allocation0 [shape = 'u32[]', space=smem, size = 0x4, offset = 0x4, fixed_abs, tag = 'smem constant byte address 0x4 - core index']
  #allocation1 [shape = 'u32[144,128]{1,0:T(1,128)}', space=vmem, size = 0x12000, scoped, tag = 'internal scratch']
  %s0 = inlined_call_operand.hbm [shape: f32[8,32], index: 0, kind: input, shape index: {}]
  %s1 = inlined_call_operand.hbm [shape: bf16[32,128], index: 1, kind: input, shape index: {}]
  %s2 = inlined_call_operand.vmem [shape: f32[1,128], index: 2, kind: input, shape index: {}]
  %s3 = inlined_call_operand.hbm [shape: bf16[128,128], index: 3, kind: input, shape index: {}]
  %s4 = inlined_call_operand.vmem [shape: f32[1,128], index: 4, kind: input, shape index: {}]
  %s5 = inlined_call_operand.hbm [shape: bf16[128,128], index: 5, kind: input, shape index: {}]
  %s6 = inlined_call_operand.vmem [shape: f32[1,128], index: 6, kind: input, shape index: {}]
  %s7 = inlined_call_operand.hbm [shape: f32[8,128], index: 7, kind: output, shape index: {}]
  %s8 = sld [smem:[#allocation0]]
  $region54: #{tpu_custom_call.1} parent=0
    _
  %s10 = ssub.s32 1, %s8
  %s11 = scalar_select 0, %s10, %s8
  $region1: #{tpu_custom_call.1} parent=0
    #allocation2 [shape = 'u8[4096]{0}', space=vmem, size = 0x1000, scoped, tag = 'input window, operand 0, single buffered']
    #allocation3 [shape = 's32[1]{0}', space=sflag, size = 0x4, scoped, tag = 'scoped memory for tpu_custom_call.1']
    #allocation4 [shape = 's32[1]{0}', space=sflag, size = 0x4, scoped, tag = 'scoped memory for tpu_custom_call.1']
    #allocation5 [shape = 'u8[8192]{0}', space=vmem, size = 0x2000, scoped, tag = 'input window, operand 1, single buffered']
    #allocation6 [shape = 's32[1]{0}', space=sflag, size = 0x4, scoped, tag = 'scoped memory for tpu_custom_call.1']
    #allocation7 [shape = 'u8[32768]{0}', space=vmem, size = 0x8000, scoped, tag = 'input window, operand 3, single buffered']
    #allocation8 [shape = 'u8[32768]{0}', space=vmem, size = 0x8000, scoped, tag = 'input window, operand 5, single buffered']
    #allocation9 [shape = 's32[1]{0}', space=sflag, size = 0x4, scoped, tag = 'scoped memory for tpu_custom_call.1']
    #allocation10 [shape = 'u8[4096]{0}', space=vmem, size = 0x1000, scoped, tag = 'output window, operand 0, single buffered']
    %12 = vsyncpa [#allocation3], 0
    %13 = vsyncpa [#allocation6], 0
    %14 = vsyncpa [#allocation9], 0
    %15 = vsyncpa [#allocation4], 0
    // Predicated region
    $region2: #{tpu_custom_call.1} parent=1 // pred_check
      _
    $region3: #{tpu_custom_call.1} parent=1 // pred_check_branch
      %17 = sbr.rel (0) target = $region5
    $region4: #{tpu_custom_call.1} parent=1 // pred_region
      %s19 = ssub.s32 128, 128
      %20 = vsyncadd [#allocation3], %s19
      %s22 = sshll.u32 [#allocation2], 4
      %s23 = int_to_ptr.vmem [resolvable:$true] %s22
      %25 = dma.hbm_to_vmem [thread:$0]  %s0, 128, %s23, [#allocation3]
    $region5: #{tpu_custom_call.1} parent=1 // pred_fallthru
      _
    // Predicated region
    $region6: #{tpu_custom_call.1} parent=1 // pred_check
      _
    $region7: #{tpu_custom_call.1} parent=1 // pred_check_branch
      %27 = sbr.rel (0) target = $region9
    $region8: #{tpu_custom_call.1} parent=1 // pred_region
      %s29 = ssub.s32 256, 256
      %30 = vsyncadd [#allocation6], %s29
      %s31 = sshll.u32 [#allocation5], 4
      %s32 = int_to_ptr.vmem [resolvable:$true] %s31
      %37 = dma.hbm_to_vmem [thread:$0]  %s1, 256, %s32, [#allocation6], 64, 64, 4
    $region9: #{tpu_custom_call.1} parent=1 // pred_fallthru
      _
    // Predicated region
    $region10: #{tpu_custom_call.1} parent=1 // pred_check
      _
    $region11: #{tpu_custom_call.1} parent=1 // pred_check_branch
      %39 = sbr.rel (0) target = $region13
    $region12: #{tpu_custom_call.1} parent=1 // pred_region
      _
    $region13: #{tpu_custom_call.1} parent=1 // pred_fallthru
      _
    // Predicated region
    $region14: #{tpu_custom_call.1} parent=1 // pred_check
      _
    $region15: #{tpu_custom_call.1} parent=1 // pred_check_branch
      %41 = sbr.rel (0) target = $region17
    $region16: #{tpu_custom_call.1} parent=1 // pred_region
      %s43 = ssub.s32 1024, 1024
      %44 = vsyncadd [#allocation6], %s43
      %s45 = sshll.u32 [#allocation7], 4
      %s46 = int_to_ptr.vmem [resolvable:$true] %s45
      %51 = dma.hbm_to_vmem [thread:$0]  %s3, 1024, %s46, [#allocation6], 64, 64, 4
    $region17: #{tpu_custom_call.1} parent=1 // pred_fallthru
      _
    // Predicated region
    $region18: #{tpu_custom_call.1} parent=1 // pred_check
      _
    $region19: #{tpu_custom_call.1} parent=1 // pred_check_branch
      %53 = sbr.rel (0) target = $region21
    $region20: #{tpu_custom_call.1} parent=1 // pred_region
      _
    $region21: #{tpu_custom_call.1} parent=1 // pred_fallthru
      _
    // Predicated region
    $region22: #{tpu_custom_call.1} parent=1 // pred_check
      _
    $region23: #{tpu_custom_call.1} parent=1 // pred_check_branch
      %55 = sbr.rel (0) target = $region25
    $region24: #{tpu_custom_call.1} parent=1 // pred_region
      %s57 = ssub.s32 1024, 1024
      %58 = vsyncadd [#allocation9], %s57
      %s59 = sshll.u32 [#allocation8], 4
      %s60 = int_to_ptr.vmem [resolvable:$true] %s59
      %65 = dma.hbm_to_vmem [thread:$0]  %s5, 1024, %s60, [#allocation9], 64, 64, 4
    $region25: #{tpu_custom_call.1} parent=1 // pred_fallthru
      _
    // Predicated region
    $region26: #{tpu_custom_call.1} parent=1 // pred_check
      _
    $region27: #{tpu_custom_call.1} parent=1 // pred_check_branch
      %67 = sbr.rel (0) target = $region29
    $region28: #{tpu_custom_call.1} parent=1 // pred_region
      _
    $region29: #{tpu_custom_call.1} parent=1 // pred_fallthru
      _
    // Predicated region
    $region30: #{tpu_custom_call.1} parent=1 // pred_check
      _
    $region31: #{tpu_custom_call.1} parent=1 // pred_check_branch
      %69 = sbr.rel (0) target = $region33
    $region32: #{tpu_custom_call.1} parent=1 // pred_region
      %70 = dma.done [#allocation3], 128
    $region33: #{tpu_custom_call.1} parent=1 // pred_fallthru
      _
    // Predicated region
    $region34: #{tpu_custom_call.1} parent=1 // pred_check
      _
    $region35: #{tpu_custom_call.1} parent=1 // pred_check_branch
      %72 = sbr.rel (0) target = $region37
    $region36: #{tpu_custom_call.1} parent=1 // pred_region
      %73 = dma.done [#allocation6], 256
    $region37: #{tpu_custom_call.1} parent=1 // pred_fallthru
      _
    // Predicated region
    $region38: #{tpu_custom_call.1} parent=1 // pred_check
      _
    $region39: #{tpu_custom_call.1} parent=1 // pred_check_branch
      %75 = sbr.rel (0) target = $region41
    $region40: #{tpu_custom_call.1} parent=1 // pred_region
      %76 = dma.done [#allocation6], 1024
    $region41: #{tpu_custom_call.1} parent=1 // pred_fallthru
      _
    // Predicated region
    $region42: #{tpu_custom_call.1} parent=1 // pred_check
      _
    $region43: #{tpu_custom_call.1} parent=1 // pred_check_branch
      %78 = sbr.rel (0) target = $region45
    $region44: #{tpu_custom_call.1} parent=1 // pred_region
      %79 = dma.done [#allocation9], 1024
    $region45: #{tpu_custom_call.1} parent=1 // pred_fallthru
      _
    %v81 = vld [vmem:[#allocation2] sm:$0xff]
    %v82 = vpack.c.bf16 %v81, %v81
    %v83 = vld [vmem:[#allocation5] sm:$0xf]
    %v84 = vld [vmem:[#allocation5 + $0x4] sm:$0xf]
    %v85 = vld [vmem:[#allocation5 + $0x8] sm:$0xf]
    %v86 = vld [vmem:[#allocation5 + $0xc] sm:$0xf]
    %v87 = vld [vmem:[%s2] sm:$0x1]
    %v89 = vlaneseq
    %v90 = vshrl.u32 %v89, 7
    %v91 = vsub.s32 0, %v90
    %v92 = vrot.slane %v87, %v91
    %v98 = vunpack.c.l.b16 %v83
    %v99 = vunpack.c.l.b16 %v84
    %v100 = vunpack.c.l.b16 %v85
    %v101 = vunpack.c.l.b16 %v86
    %v102 = vpack.c.b16 %v99, %v98
    %v103 = vpack.c.b16 %v101, %v100
    %vm106 = vcmask 261120
    %v108 = vsel %vm106, %v82, 0
    %110 = vmatprep.subr.bf16.mxu0 0
    %111 = vmatpush1.bf16.msra.mxu0 %v102
    %112 = vmatprep.subr.bf16.mxu0 0
    %113 = vmatpush1.bf16.msra.mxu0 %v103
    %114 = vmatprep.subr.bf16.mxu0 0
    %115 = vmatpush1.bf16.msra.mxu0 0
    %116 = vmatprep.subr.bf16.mxu0 0
    %117 = vmatpush1.bf16.msra.mxu0 0
    %118 = vmatprep.subr.bf16.mxu0 0
    %119 = vmatpush1.bf16.msra.mxu0 0
    %120 = vmatprep.subr.bf16.mxu0 0
    %121 = vmatpush1.bf16.msra.mxu0 0
    %122 = vmatprep.subr.bf16.mxu0 0
    %123 = vmatpush1.bf16.msra.mxu0 0
    %124 = vmatprep.subr.bf16.mxu0 0
    %125 = vmatpush1.bf16.msra.mxu0 0
    %126 = vmatprep.subr.bf16.mxu0 0
    %127 = vmatpush1.bf16.msra.mxu0 0
    %128 = vmatprep.subr.bf16.mxu0 0
    %129 = vmatpush1.bf16.msra.mxu0 0
    %130 = vmatprep.subr.bf16.mxu0 0
    %131 = vmatpush1.bf16.msra.mxu0 0
    %132 = vmatprep.subr.bf16.mxu0 0
    %133 = vmatpush1.bf16.msra.mxu0 0
    %134 = vmatprep.subr.bf16.mxu0 0
    %135 = vmatpush1.bf16.msra.mxu0 0
    %136 = vmatprep.subr.bf16.mxu0 0
    %137 = vmatpush1.bf16.msra.mxu0 0
    %138 = vmatprep.subr.bf16.mxu0 0
    %139 = vmatpush1.bf16.msra.mxu0 0
    %140 = vmatprep.subr.bf16.mxu0 0
    %141 = vmatpush1.bf16.msra.mxu0 0
    %142 = vmatprep.mubr.bf16.mxu0 0
    %143 = vmatmul.mubr.bf16.gmra.mrb[0].mxu0 %v108
    %v144 = vpop.f32.mrb[0].mxu0
    %v145 = vadd.f32 %v92, %v144
    %v146 = vpop.f32.mrb[0].mxu0
    %v147 = vpop.f32.mrb[0].mxu0
    %v148 = vpop.f32.mrb[0].mxu0
    %149 = vdwg.mxu0
    %v150 = vsub.f32 0.0, %v145
    %v151 = vmul.f32 %v150, 1.442695
    %v152 = vpow.pop %v151
    %v153 = vadd.f32 %v152, 1.0
    %v154 = vrcp.pop %v153
    %v155 = vpack.c.bf16 %v154, %v154
    %v156 = vld [vmem:[#allocation7] sm:$0xf]
    %v157 = vld [vmem:[#allocation7 + $0x4] sm:$0xf]
    %v158 = vld [vmem:[#allocation7 + $0x8] sm:$0xf]
    %v159 = vld [vmem:[#allocation7 + $0xc] sm:$0xf]
    %v160 = vld [vmem:[#allocation7 + $0x10] sm:$0xf]
    %v161 = vld [vmem:[#allocation7 + $0x14] sm:$0xf]
    %v162 = vld [vmem:[#allocation7 + $0x18] sm:$0xf]
    %v163 = vld [vmem:[#allocation7 + $0x1c] sm:$0xf]
    %v164 = vld [vmem:[#allocation7 + $0x20] sm:$0xf]
    %v165 = vld [vmem:[#allocation7 + $0x24] sm:$0xf]
    %v166 = vld [vmem:[#allocation7 + $0x28] sm:$0xf]
    %v167 = vld [vmem:[#allocation7 + $0x2c] sm:$0xf]
    %v168 = vld [vmem:[#allocation7 + $0x30] sm:$0xf]
    %v169 = vld [vmem:[#allocation7 + $0x34] sm:$0xf]
    %v170 = vld [vmem:[#allocation7 + $0x38] sm:$0xf]
    %v171 = vld [vmem:[#allocation7 + $0x3c] sm:$0xf]
    %v172 = vld [vmem:[%s4] sm:$0x1]
    %v174 = vlaneseq
    %v175 = vshrl.u32 %v174, 7
    %v176 = vsub.s32 0, %v175
    %v177 = vrot.slane %v172, %v176
    %v195 = vunpack.c.l.b16 %v156
    %v196 = vunpack.c.l.b16 %v157
    %v197 = vunpack.c.l.b16 %v158
    %v198 = vunpack.c.l.b16 %v159
    %v199 = vunpack.c.l.b16 %v160
    %v200 = vunpack.c.l.b16 %v161
    %v201 = vunpack.c.l.b16 %v162
    %v202 = vunpack.c.l.b16 %v163
    %v203 = vunpack.c.l.b16 %v164
    %v204 = vunpack.c.l.b16 %v165
    %v205 = vunpack.c.l.b16 %v166
    %v206 = vunpack.c.l.b16 %v167
    %v207 = vunpack.c.l.b16 %v168
    %v208 = vunpack.c.l.b16 %v169
    %v209 = vunpack.c.l.b16 %v170
    %v210 = vunpack.c.l.b16 %v171
    %v211 = vpack.c.b16 %v196, %v195
    %v212 = vpack.c.b16 %v198, %v197
    %v213 = vpack.c.b16 %v200, %v199
    %v214 = vpack.c.b16 %v202, %v201
    %v215 = vpack.c.b16 %v204, %v203
    %v216 = vpack.c.b16 %v206, %v205
    %v217 = vpack.c.b16 %v208, %v207
    %v218 = vpack.c.b16 %v210, %v209
    %227 = vmatprep.subr.bf16.mxu0 0
    %228 = vmatpush1.bf16.msra.mxu0 %v211
    %229 = vmatprep.subr.bf16.mxu0 0
    %230 = vmatpush1.bf16.msra.mxu0 %v212
    %231 = vmatprep.subr.bf16.mxu0 0
    %232 = vmatpush1.bf16.msra.mxu0 %v213
    %233 = vmatprep.subr.bf16.mxu0 0
    %234 = vmatpush1.bf16.msra.mxu0 %v214
    %235 = vmatprep.subr.bf16.mxu0 0
    %236 = vmatpush1.bf16.msra.mxu0 %v215
    %237 = vmatprep.subr.bf16.mxu0 0
    %238 = vmatpush1.bf16.msra.mxu0 %v216
    %239 = vmatprep.subr.bf16.mxu0 0
    %240 = vmatpush1.bf16.msra.mxu0 %v217
    %241 = vmatprep.subr.bf16.mxu0 0
    %242 = vmatpush1.bf16.msra.mxu0 %v218
    %243 = vmatprep.subr.bf16.mxu0 0
    %244 = vmatpush1.bf16.msra.mxu0 0
    %245 = vmatprep.subr.bf16.mxu0 0
    %246 = vmatpush1.bf16.msra.mxu0 0
    %247 = vmatprep.subr.bf16.mxu0 0
    %248 = vmatpush1.bf16.msra.mxu0 0
    %249 = vmatprep.subr.bf16.mxu0 0
    %250 = vmatpush1.bf16.msra.mxu0 0
    %251 = vmatprep.subr.bf16.mxu0 0
    %252 = vmatpush1.bf16.msra.mxu0 0
    %253 = vmatprep.subr.bf16.mxu0 0
    %254 = vmatpush1.bf16.msra.mxu0 0
    %255 = vmatprep.subr.bf16.mxu0 0
    %256 = vmatpush1.bf16.msra.mxu0 0
    %257 = vmatprep.subr.bf16.mxu0 0
    %258 = vmatpush1.bf16.msra.mxu0 0
    %259 = vmatprep.mubr.bf16.mxu0 0
    %260 = vmatmul.mubr.bf16.gmra.mrb[0].mxu0 %v155
    %v261 = vpop.f32.mrb[0].mxu0
    %v262 = vadd.f32 %v177, %v261
    %v263 = vpop.f32.mrb[0].mxu0
    %v264 = vpop.f32.mrb[0].mxu0
    %v265 = vpop.f32.mrb[0].mxu0
    %266 = vdwg.mxu0
    %v267 = vsub.f32 0.0, %v262
    %v268 = vmul.f32 %v267, 1.442695
    %v269 = vpow.pop %v268
    %v270 = vadd.f32 %v269, 1.0
    %v271 = vrcp.pop %v270
    %v272 = vpack.c.bf16 %v271, %v271
    %v273 = vld [vmem:[#allocation8] sm:$0xf]
    %v274 = vld [vmem:[#allocation8 + $0x4] sm:$0xf]
    %v275 = vld [vmem:[#allocation8 + $0x8] sm:$0xf]
    %v276 = vld [vmem:[#allocation8 + $0xc] sm:$0xf]
    %v277 = vld [vmem:[#allocation8 + $0x10] sm:$0xf]
    %v278 = vld [vmem:[#allocation8 + $0x14] sm:$0xf]
    %v279 = vld [vmem:[#allocation8 + $0x18] sm:$0xf]
    %v280 = vld [vmem:[#allocation8 + $0x1c] sm:$0xf]
    %v281 = vld [vmem:[#allocation8 + $0x20] sm:$0xf]
    %v282 = vld [vmem:[#allocation8 + $0x24] sm:$0xf]
    %v283 = vld [vmem:[#allocation8 + $0x28] sm:$0xf]
    %v284 = vld [vmem:[#allocation8 + $0x2c] sm:$0xf]
    %v285 = vld [vmem:[#allocation8 + $0x30] sm:$0xf]
    %v286 = vld [vmem:[#allocation8 + $0x34] sm:$0xf]
    %v287 = vld [vmem:[#allocation8 + $0x38] sm:$0xf]
    %v288 = vld [vmem:[#allocation8 + $0x3c] sm:$0xf]
    %v289 = vld [vmem:[%s6] sm:$0x1]
    %v291 = vlaneseq
    %v292 = vshrl.u32 %v291, 7
    %v293 = vsub.s32 0, %v292
    %v294 = vrot.slane %v289, %v293
    %v312 = vunpack.c.l.b16 %v273
    %v313 = vunpack.c.l.b16 %v274
    %v314 = vunpack.c.l.b16 %v275
    %v315 = vunpack.c.l.b16 %v276
    %v316 = vunpack.c.l.b16 %v277
    %v317 = vunpack.c.l.b16 %v278
    %v318 = vunpack.c.l.b16 %v279
    %v319 = vunpack.c.l.b16 %v280
    %v320 = vunpack.c.l.b16 %v281
    %v321 = vunpack.c.l.b16 %v282
    %v322 = vunpack.c.l.b16 %v283
    %v323 = vunpack.c.l.b16 %v284
    %v324 = vunpack.c.l.b16 %v285
    %v325 = vunpack.c.l.b16 %v286
    %v326 = vunpack.c.l.b16 %v287
    %v327 = vunpack.c.l.b16 %v288
    %v328 = vpack.c.b16 %v313, %v312
    %v329 = vpack.c.b16 %v315, %v314
    %v330 = vpack.c.b16 %v317, %v316
    %v331 = vpack.c.b16 %v319, %v318
    %v332 = vpack.c.b16 %v321, %v320
    %v333 = vpack.c.b16 %v323, %v322
    %v334 = vpack.c.b16 %v325, %v324
    %v335 = vpack.c.b16 %v327, %v326
    %344 = vmatprep.subr.bf16.mxu0 0
    %345 = vmatpush1.bf16.msra.mxu0 %v328
    %346 = vmatprep.subr.bf16.mxu0 0
    %347 = vmatpush1.bf16.msra.mxu0 %v329
    %348 = vmatprep.subr.bf16.mxu0 0
    %349 = vmatpush1.bf16.msra.mxu0 %v330
    %350 = vmatprep.subr.bf16.mxu0 0
    %351 = vmatpush1.bf16.msra.mxu0 %v331
    %352 = vmatprep.subr.bf16.mxu0 0
    %353 = vmatpush1.bf16.msra.mxu0 %v332
    %354 = vmatprep.subr.bf16.mxu0 0
    %355 = vmatpush1.bf16.msra.mxu0 %v333
    %356 = vmatprep.subr.bf16.mxu0 0
    %357 = vmatpush1.bf16.msra.mxu0 %v334
    %358 = vmatprep.subr.bf16.mxu0 0
    %359 = vmatpush1.bf16.msra.mxu0 %v335
    %360 = vmatprep.subr.bf16.mxu0 0
    %361 = vmatpush1.bf16.msra.mxu0 0
    %362 = vmatprep.subr.bf16.mxu0 0
    %363 = vmatpush1.bf16.msra.mxu0 0
    %364 = vmatprep.subr.bf16.mxu0 0
    %365 = vmatpush1.bf16.msra.mxu0 0
    %366 = vmatprep.subr.bf16.mxu0 0
    %367 = vmatpush1.bf16.msra.mxu0 0
    %368 = vmatprep.subr.bf16.mxu0 0
    %369 = vmatpush1.bf16.msra.mxu0 0
    %370 = vmatprep.subr.bf16.mxu0 0
    %371 = vmatpush1.bf16.msra.mxu0 0
    %372 = vmatprep.subr.bf16.mxu0 0
    %373 = vmatpush1.bf16.msra.mxu0 0
    %374 = vmatprep.subr.bf16.mxu0 0
    %375 = vmatpush1.bf16.msra.mxu0 0
    %376 = vmatprep.mubr.bf16.mxu0 0
    %377 = vmatmul.mubr.bf16.gmra.mrb[0].mxu0 %v272
    %v378 = vpop.f32.mrb[0].mxu0
    %v379 = vadd.f32 %v294, %v378
    %v380 = vpop.f32.mrb[0].mxu0
    %v381 = vpop.f32.mrb[0].mxu0
    %v382 = vpop.f32.mrb[0].mxu0
    %383 = vdwg.mxu0
    %384 = vst [vmem:[#allocation10] sm:$0xff] %v379
    // Predicated region
    $region46: #{tpu_custom_call.1} parent=1 // pred_check
      _
    $region47: #{tpu_custom_call.1} parent=1 // pred_check_branch
      %386 = sbr.rel (0) target = $region49
    $region48: #{tpu_custom_call.1} parent=1 // pred_region
      %s388 = ssub.s32 128, 128
      %389 = vsyncadd [#allocation4], %s388
      %s391 = sshll.u32 [#allocation10], 4
      %s392 = int_to_ptr.vmem [resolvable:$true] %s391
      %394 = dma.vmem_to_hbm [thread:$0]  %s392, 128, %s7, [#allocation4]
    $region49: #{tpu_custom_call.1} parent=1 // pred_fallthru
      _
    // Predicated region
    $region50: #{tpu_custom_call.1} parent=1 // pred_check
      _
    $region51: #{tpu_custom_call.1} parent=1 // pred_check_branch
      %396 = sbr.rel (0) target = $region53
    $region52: #{tpu_custom_call.1} parent=1 // pred_region
      %397 = dma.done [#allocation4], 128
    $region53: #{tpu_custom_call.1} parent=1 // pred_fallthru
      _
    %398 = vsyncpa [#allocation3], 1
    %399 = vsyncpa [#allocation6], 1
    %400 = vsyncpa [#allocation9], 1
    %401 = vsyncpa [#allocation4], 1

</llo_original>
